<compile_context>
chip_gen: v5e
topology: v5e:2x2
jax: 0.10.0
libtpu: 0.0.40
codegen_flags: <defaults>
</compile_context>

<pallas_src>
import functools

import jax
import jax.numpy as jnp
from jax import lax
from jax.experimental import pallas as pl
from jax.experimental.pallas import tpu as pltpu

_LANE = 128
_SUBLANE = 8


def _round_up(x, m):
  return (x + m - 1) // m * m


def _cdiv(a, b):
  return (a + b - 1) // b


def _vmem_budget_bytes():
  """~75% of physical VMEM (review: ~48-56 MiB on v7x, ~64-100 MiB on v5e/v6e)."""
  cap = None
  try:
    cap = getattr(pltpu.get_tpu_info(), "vmem_capacity_bytes", None)
  except Exception:
    cap = None
  if not cap:
    cap = 64 * 1024 * 1024            # conservative (v7x-sized) fallback
  return int(cap) * 3 // 4


def _conv_stats_kernel(x_ref, w_ref, y_ref, sum_ref, sumsq_ref, *,
                       TH, Wo, KH, KW, stride, C_pad):
  """One (image n, row-band h) tile: KH*KW tap matmuls + BN partial stats.

  x_ref:     (1, Hp, Wp, Cin)    padded NHWC image, VMEM-resident across h
  w_ref:     (KH*KW, Cin, C_pad) conv weight (grid-invariant, fetched once)
  y_ref:     (1, TH, Wo, C_pad)  conv activations for this tile (caller dtype)
  sum_ref:   (1, 8, C_pad)       per-image partial sum (row 0 used)
  sumsq_ref: (1, 8, C_pad)       per-image partial sum of squares (row 0 used)
  """
  h = pl.program_id(1)

  @pl.when(h == 0)
  def _():
    sum_ref[...] = jnp.zeros_like(sum_ref)
    sumsq_ref[...] = jnp.zeros_like(sumsq_ref)

  w_cols = (Wo - 1) * stride + 1

  def row_body(th, carry):
    s_acc, q_acc = carry
    r0 = (h * TH + th) * stride
    acc = jnp.zeros((Wo, C_pad), jnp.float32)
    for i in range(KH):
      xrow = x_ref[0, r0 + i, :, :]                       # (Wp, Cin)
      for j in range(KW):
        xt = xrow[j:j + w_cols:stride, :]                 # (Wo, Cin)
        acc = acc + jnp.dot(xt, w_ref[i * KW + j],
                            preferred_element_type=jnp.float32)
    # Write conv activations in the caller dtype; stats use the f32 `acc`.
    y_ref[0, th] = acc.astype(y_ref.dtype)
    s_acc = s_acc + jnp.sum(acc, axis=0, keepdims=True)
    q_acc = q_acc + jnp.sum(acc * acc, axis=0, keepdims=True)
    return s_acc, q_acc

  zero = jnp.zeros((1, C_pad), jnp.float32)
  s, q = lax.fori_loop(0, TH, row_body, (zero, zero))
  sum_ref[0, 0:1, :] += s
  sumsq_ref[0, 0:1, :] += q
  # TODO(synk): per-row matmuls (M=Wo) under-feed the MXU for compute-bound
  # layers; a (TH*Wo, Cin) band matmul needs an in-kernel reshape/relayout.


def _bn_relu_kernel(y_ref, scale_ref, shift_ref, o_ref):
  """Fused BN(training-mode)+ReLU epilogue: one FMA + ReLU sweep per tile."""
  y = y_ref[...].astype(jnp.float32)                      # (1, TH, Wo, C_pad)
  out = jnp.maximum(y * scale_ref[...] + shift_ref[...], 0.0)
  o_ref[...] = out.astype(o_ref.dtype)


def conv_bn_relu(x_nchw, conv_w_oihw, bn_gamma, bn_beta, *,
                 stride, padding, eps=1e-5):
  """Mirror of ConvBnReluLayer.forward (bias=False conv, training-mode BN)."""
  N, Cin, H, W = x_nchw.shape
  Cout, Cin_w, KH, KW = conv_w_oihw.shape
  assert Cin == Cin_w
  Ho = (H + 2 * padding - KH) // stride + 1
  Wo = (W + 2 * padding - KW) // stride + 1

  dtype = x_nchw.dtype               # bf16 callers stay bf16 on the MXU
  C_pad = _round_up(Cout, _LANE)
  Wp = W + 2 * padding

  # ---- row-band tile sizing + device-aware VMEM budget ---------------------
  vmem_budget = _vmem_budget_bytes()
  itemsize = jnp.dtype(dtype).itemsize
  TH = max(1, min(Ho, _cdiv(512, Wo)))     # ~512 output pixels per grid step
  while True:
    n_h = _cdiv(Ho, TH)
    Ho_pad = n_h * TH
    Hp = max(H + 2 * padding, (Ho_pad - 1) * stride + KH)
    est = (2 * Hp * _round_up(Wp, _SUBLANE) * _round_up(Cin, _LANE) * itemsize
           + 2 * KH * KW * _round_up(Cin, _SUBLANE) * C_pad * itemsize
           + 2 * TH * _round_up(Wo, _SUBLANE) * C_pad * itemsize
           + 4 * _SUBLANE * C_pad * 4)
    if est <= vmem_budget or TH == 1:
      break
    TH = max(1, TH // 2)
  # TODO(synk): very large images (resident Hp*Wp*Cin beyond the VMEM budget)
  # need a manually DMA'd row-slab double buffer instead of a resident image.

  # ---- glue: NCHW -> NHWC in compute dtype, zero spatial padding only ------
  x = jnp.transpose(x_nchw.astype(dtype), (0, 2, 3, 1))          # (N, H, W, Cin)
  x = jnp.pad(x, ((0, 0), (padding, Hp - H - padding),
                  (padding, padding), (0, 0)))                   # (N, Hp, Wp, Cin)
  # Conv weight OIHW -> (KH*KW, Cin, C_pad); channel zero-padding is exact.
  w = jnp.transpose(conv_w_oihw, (2, 3, 1, 0)).reshape(KH * KW, Cin, Cout)
  w = jnp.pad(w.astype(dtype), ((0, 0), (0, 0), (0, C_pad - Cout)))
  gamma = jnp.pad(bn_gamma.reshape(1, Cout).astype(jnp.float32),
                  ((0, 0), (0, C_pad - Cout)))
  beta = jnp.pad(bn_beta.reshape(1, Cout).astype(jnp.float32),
                 ((0, 0), (0, C_pad - Cout)))

  # ---- kernel 1: in-kernel patch gather + conv + per-image BN partials -----
  k1 = functools.partial(_conv_stats_kernel, TH=TH, Wo=Wo, KH=KH, KW=KW,
                         stride=stride, C_pad=C_pad)
  y, psum, psumsq = pl.pallas_call(
      k1,
      out_shape=(jax.ShapeDtypeStruct((N, Ho_pad, Wo, C_pad), dtype),
                 jax.ShapeDtypeStruct((N, _SUBLANE, C_pad), jnp.float32),
                 jax.ShapeDtypeStruct((N, _SUBLANE, C_pad), jnp.float32)),
      grid_spec=pltpu.PrefetchScalarGridSpec(
          num_scalar_prefetch=0,
          grid=(N, n_h),
          in_specs=[
              # Whole padded image: block index constant along h, so it is
              # DMA'd once per image and stays VMEM-resident across row tiles.
              pl.BlockSpec((1, Hp, Wp, Cin), lambda n, h: (n, 0, 0, 0)),
              # Grid-invariant weight (fetched once).
              # TODO(synk): single-buffer it (pipeline_mode=pl.Buffered(1)) to
              # reclaim its second VMEM buffer; with the tile sizes chosen
              # here VMEM has ample headroom, so it is left default-buffered.
              pl.BlockSpec((KH * KW, Cin, C_pad), lambda n, h: (0, 0, 0)),
          ],
          out_specs=[
              pl.BlockSpec((1, TH, Wo, C_pad), lambda n, h: (n, h, 0, 0)),
              pl.BlockSpec((1, _SUBLANE, C_pad), lambda n, h: (n, 0, 0)),
              pl.BlockSpec((1, _SUBLANE, C_pad), lambda n, h: (n, 0, 0)),
          ]),
      compiler_params=pltpu.CompilerParams(
          # Batch axis parallel (per-image partial accumulators -> no
          # cross-core races, lets v7x shard across its two TensorCores);
          # the row-tile axis accumulates stats -> arbitrary.
          dimension_semantics=("parallel", "arbitrary"),
          vmem_limit_bytes=vmem_budget),
  )(x, w)

  # ---- tiny XLA glue: fold per-image partials into BN scale/shift ----------
  count = jnp.float32(N * Ho * Wo)
  total = jnp.sum(psum[:, 0, :], axis=0, keepdims=True)          # (1, C_pad)
  total_sq = jnp.sum(psumsq[:, 0, :], axis=0, keepdims=True)
  mean = total / count
  # Clamp guards E[x^2]-E[x]^2 cancellation (review correctness concern).
  # TODO(synk): Welford / shifted moments if this precision ever matters.
  var = jnp.maximum(total_sq / count - mean * mean, 0.0)
  scale = gamma * jax.lax.rsqrt(var + eps)                       # (1, C_pad)
  shift = beta - mean * scale
  scale4 = scale.reshape(1, 1, 1, C_pad)
  shift4 = shift.reshape(1, 1, 1, C_pad)

  # ---- kernel 2: lane-dense fused FMA + ReLU sweep (both axes parallel) ----
  out4 = pl.pallas_call(
      _bn_relu_kernel,
      out_shape=jax.ShapeDtypeStruct((N, Ho_pad, Wo, C_pad), dtype),
      grid_spec=pltpu.PrefetchScalarGridSpec(
          num_scalar_prefetch=0,
          grid=(N, n_h),
          in_specs=[
              pl.BlockSpec((1, TH, Wo, C_pad), lambda n, h: (n, h, 0, 0)),
              pl.BlockSpec((1, 1, 1, C_pad), lambda n, h: (0, 0, 0, 0)),
              pl.BlockSpec((1, 1, 1, C_pad), lambda n, h: (0, 0, 0, 0)),
          ],
          out_specs=pl.BlockSpec((1, TH, Wo, C_pad),
                                 lambda n, h: (n, h, 0, 0))),
      compiler_params=pltpu.CompilerParams(
          dimension_semantics=("parallel", "parallel"),
          vmem_limit_bytes=vmem_budget),
  )(y, scale4, shift4)
  # TODO(synk): when M*C_pad fits the VMEM budget, fuse the two passes into a
  # single pallas_call with a VMEM-resident y scratch so y never touches HBM.

  # ---- glue: strip padding, NHWC -> NCHW (module contract is NCHW) ---------
  out = out4[:, :Ho, :, :Cout]
  return jnp.transpose(out, (0, 3, 1, 2))


if __name__ == "__main__":
  key = jax.random.PRNGKey(0)
  kx, kw, kg, kb = jax.random.split(key, 4)

  # ConvBnReluLayer(inplanes=4, planes=8, kernel_size=3, padding=1, stride=1)
  N, Cin, H, W = 2, 4, 16, 16
  Cout, KH, KW = 8, 3, 3
  stride, padding = 1, 1

  x = jax.random.normal(kx, (N, Cin, H, W), jnp.float32)
  conv_w = 0.1 * jax.random.normal(kw, (Cout, Cin, KH, KW), jnp.float32)
  bn_gamma = 1.0 + 0.1 * jax.random.normal(kg, (Cout,), jnp.float32)
  bn_beta = 0.1 * jax.random.normal(kb, (Cout,), jnp.float32)

  out = conv_bn_relu(x, conv_w, bn_gamma, bn_beta,
                     stride=stride, padding=padding)
  out = jax.block_until_ready(out)

  # Pure-JAX reference with identical (PyTorch training-mode) semantics.
  conv_ref = jax.lax.conv_general_dilated(
      x, conv_w, (stride, stride), [(padding, padding), (padding, padding)],
      dimension_numbers=("NCHW", "OIHW", "NCHW"))
  mean = conv_ref.mean(axis=(0, 2, 3), keepdims=True)
  var = ((conv_ref - mean) ** 2).mean(axis=(0, 2, 3), keepdims=True)
  ref = (conv_ref - mean) * jax.lax.rsqrt(var + 1e-5)
  ref = ref * bn_gamma.reshape(1, -1, 1, 1) + bn_beta.reshape(1, -1, 1, 1)
  ref = jnp.maximum(ref, 0.0)

  assert out.shape == (N, Cout, H, W), out.shape
  max_err = float(jnp.max(jnp.abs(out - ref)))
  assert jnp.allclose(out, ref, atol=1e-4, rtol=1e-4), max_err
  print("KERNEL_OK")
</pallas_src>

<mosaic_0001>
module attributes {stable_mosaic.version = 11 : i64} {
  func.func @_conv_stats_kernel(%arg0: i32, %arg1: i32, %arg2: memref<1x18x18x4xf32, #tpu.memory_space<vmem>>, %arg3: memref<9x4x128xf32, #tpu.memory_space<vmem>>, %arg4: memref<1x16x16x128xf32, #tpu.memory_space<vmem>>, %arg5: memref<1x8x128xf32, #tpu.memory_space<vmem>>, %arg6: memref<1x8x128xf32, #tpu.memory_space<vmem>>) attributes {dimension_semantics = [#tpu.dimension_semantics<parallel>, #tpu.dimension_semantics<arbitrary>], iteration_bounds = array<i64: 2, 1>, scalar_prefetch = 0 : i64, scratch_operands = 0 : i64, tpu.core_type = #tpu.core_type<tc>, window_params = [{transform_indices = @transform_0, window_bounds = array<i64: 1, 18, 18, 4>}, {pipeline_mode = #tpu.pipeline_mode<synchronous>, transform_indices = @transform_1, window_bounds = array<i64: 9, 4, 128>}, {transform_indices = @transform_2, window_bounds = array<i64: 1, 16, 16, 128>}, {transform_indices = @transform_3, window_bounds = array<i64: 1, 8, 128>}, {transform_indices = @transform_4, window_bounds = array<i64: 1, 8, 128>}]} {
    %c0_i32 = arith.constant 0 : i32
    %0 = arith.cmpi eq, %arg1, %c0_i32 : i32
    %1 = arith.extui %0 : i1 to i32
    %c0_i32_0 = arith.constant 0 : i32
    %2 = arith.cmpi ne, %1, %c0_i32_0 : i32
    scf.if %2 {
      %cst_14 = arith.constant 0.000000e+00 : f32
      %18 = vector.broadcast %cst_14 : f32 to vector<1x8x128xf32>
      %c0_15 = arith.constant 0 : index
      %c0_16 = arith.constant 0 : index
      %c0_17 = arith.constant 0 : index
      %19 = vector.load %arg5[%c0_15, %c0_16, %c0_17] : memref<1x8x128xf32, #tpu.memory_space<vmem>>, vector<1x8x128xf32>
      tpu.vector_store %arg5[%c0_15, %c0_16, %c0_17], %18 {strides = array<i32>} : memref<1x8x128xf32, #tpu.memory_space<vmem>>, vector<1x8x128xf32>,
      %cst_18 = arith.constant 0.000000e+00 : f32
      %20 = vector.broadcast %cst_18 : f32 to vector<1x8x128xf32>
      %c0_19 = arith.constant 0 : index
      %c0_20 = arith.constant 0 : index
      %c0_21 = arith.constant 0 : index
      %21 = vector.load %arg6[%c0_19, %c0_20, %c0_21] : memref<1x8x128xf32, #tpu.memory_space<vmem>>, vector<1x8x128xf32>
      tpu.vector_store %arg6[%c0_19, %c0_20, %c0_21], %20 {strides = array<i32>} : memref<1x8x128xf32, #tpu.memory_space<vmem>>, vector<1x8x128xf32>,
    } else {
    }
    %cst = arith.constant 0.000000e+00 : f32
    %3 = vector.broadcast %cst : f32 to vector<1x128xf32>
    %c0_i32_1 = arith.constant 0 : i32
    %c16_i32 = arith.constant 16 : i32
    %4 = arith.addi %c0_i32_1, %c16_i32 : i32
    %c1_i32 = arith.constant 1 : i32
    %5:2 = scf.for %arg7 = %c0_i32_1 to %4 step %c1_i32 iter_args(%arg8 = %3, %arg9 = %3) -> (vector<1x128xf32>, vector<1x128xf32>)  : i32 {
      %c16_i32_14 = arith.constant 16 : i32
      %18 = arith.muli %arg1, %c16_i32_14 : i32
      %19 = arith.addi %18, %arg7 : i32
      %c1_i32_15 = arith.constant 1 : i32
      %20 = arith.muli %19, %c1_i32_15 : i32
      %cst_16 = arith.constant 0.000000e+00 : f32
      %21 = vector.broadcast %cst_16 : f32 to vector<16x128xf32>
      %c0_i32_17 = arith.constant 0 : i32
      %22 = arith.addi %20, %c0_i32_17 : i32
      %c0_18 = arith.constant 0 : index
      %23 = arith.index_cast %22 : i32 to index
      %c0_19 = arith.constant 0 : index
      %c0_20 = arith.constant 0 : index
      %24 = vector.load %arg2[%c0_18, %23, %c0_19, %c0_20] : memref<1x18x18x4xf32, #tpu.memory_space<vmem>>, vector<1x1x18x4xf32>
      %25 = vector.shape_cast %24 : vector<1x1x18x4xf32> to vector<18x4xf32>
      %26 = vector.extract_strided_slice %25 {offsets = [0, 0], sizes = [16, 4], strides = [1, 1]} : vector<18x4xf32> to vector<16x4xf32>
      %c0_21 = arith.constant 0 : index
      %c0_22 = arith.constant 0 : index
      %c0_23 = arith.constant 0 : index
      %27 = vector.load %arg3[%c0_21, %c0_22, %c0_23] : memref<9x4x128xf32, #tpu.memory_space<vmem>>, vector<1x4x128xf32>
      %28 = vector.shape_cast %27 : vector<1x4x128xf32> to vector<4x128xf32>
      %cst_24 = arith.constant dense<0.000000e+00> : vector<16x128xf32>
      %29 = tpu.matmul %26, %28, %cst_24 {dimension_numbers = #tpu.dot_dimension_numbers<[1], [0], [0], [1], [0, 0, 1, 1], [], []>} : vector<16x4xf32>, vector<4x128xf32>, vector<16x128xf32> -> vector<16x128xf32>
      %30 = arith.addf %21, %29 : vector<16x128xf32>
      %31 = vector.extract_strided_slice %25 {offsets = [1, 0], sizes = [16, 4], strides = [1, 1]} : vector<18x4xf32> to vector<16x4xf32>
      %c1 = arith.constant 1 : index
      %c0_25 = arith.constant 0 : index
      %c0_26 = arith.constant 0 : index
      %32 = vector.load %arg3[%c1, %c0_25, %c0_26] : memref<9x4x128xf32, #tpu.memory_space<vmem>>, vector<1x4x128xf32>
      %33 = vector.shape_cast %32 : vector<1x4x128xf32> to vector<4x128xf32>
      %cst_27 = arith.constant dense<0.000000e+00> : vector<16x128xf32>
      %34 = tpu.matmul %31, %33, %cst_27 {dimension_numbers = #tpu.dot_dimension_numbers<[1], [0], [0], [1], [0, 0, 1, 1], [], []>} : vector<16x4xf32>, vector<4x128xf32>, vector<16x128xf32> -> vector<16x128xf32>
      %35 = arith.addf %30, %34 : vector<16x128xf32>
      %36 = vector.extract_strided_slice %25 {offsets = [2, 0], sizes = [16, 4], strides = [1, 1]} : vector<18x4xf32> to vector<16x4xf32>
      %c2 = arith.constant 2 : index
      %c0_28 = arith.constant 0 : index
      %c0_29 = arith.constant 0 : index
      %37 = vector.load %arg3[%c2, %c0_28, %c0_29] : memref<9x4x128xf32, #tpu.memory_space<vmem>>, vector<1x4x128xf32>
      %38 = vector.shape_cast %37 : vector<1x4x128xf32> to vector<4x128xf32>
      %cst_30 = arith.constant dense<0.000000e+00> : vector<16x128xf32>
      %39 = tpu.matmul %36, %38, %cst_30 {dimension_numbers = #tpu.dot_dimension_numbers<[1], [0], [0], [1], [0, 0, 1, 1], [], []>} : vector<16x4xf32>, vector<4x128xf32>, vector<16x128xf32> -> vector<16x128xf32>
      %40 = arith.addf %35, %39 : vector<16x128xf32>
      %c1_i32_31 = arith.constant 1 : i32
      %41 = arith.addi %20, %c1_i32_31 : i32
      %c0_32 = arith.constant 0 : index
      %42 = arith.index_cast %41 : i32 to index
      %c0_33 = arith.constant 0 : index
      %c0_34 = arith.constant 0 : index
      %43 = vector.load %arg2[%c0_32, %42, %c0_33, %c0_34] : memref<1x18x18x4xf32, #tpu.memory_space<vmem>>, vector<1x1x18x4xf32>
      %44 = vector.shape_cast %43 : vector<1x1x18x4xf32> to vector<18x4xf32>
      %45 = vector.extract_strided_slice %44 {offsets = [0, 0], sizes = [16, 4], strides = [1, 1]} : vector<18x4xf32> to vector<16x4xf32>
      %c3 = arith.constant 3 : index
      %c0_35 = arith.constant 0 : index
      %c0_36 = arith.constant 0 : index
      %46 = vector.load %arg3[%c3, %c0_35, %c0_36] : memref<9x4x128xf32, #tpu.memory_space<vmem>>, vector<1x4x128xf32>
      %47 = vector.shape_cast %46 : vector<1x4x128xf32> to vector<4x128xf32>
      %cst_37 = arith.constant dense<0.000000e+00> : vector<16x128xf32>
      %48 = tpu.matmul %45, %47, %cst_37 {dimension_numbers = #tpu.dot_dimension_numbers<[1], [0], [0], [1], [0, 0, 1, 1], [], []>} : vector<16x4xf32>, vector<4x128xf32>, vector<16x128xf32> -> vector<16x128xf32>
      %49 = arith.addf %40, %48 : vector<16x128xf32>
      %50 = vector.extract_strided_slice %44 {offsets = [1, 0], sizes = [16, 4], strides = [1, 1]} : vector<18x4xf32> to vector<16x4xf32>
      %c4 = arith.constant 4 : index
      %c0_38 = arith.constant 0 : index
      %c0_39 = arith.constant 0 : index
      %51 = vector.load %arg3[%c4, %c0_38, %c0_39] : memref<9x4x128xf32, #tpu.memory_space<vmem>>, vector<1x4x128xf32>
      %52 = vector.shape_cast %51 : vector<1x4x128xf32> to vector<4x128xf32>
      %cst_40 = arith.constant dense<0.000000e+00> : vector<16x128xf32>
      %53 = tpu.matmul %50, %52, %cst_40 {dimension_numbers = #tpu.dot_dimension_numbers<[1], [0], [0], [1], [0, 0, 1, 1], [], []>} : vector<16x4xf32>, vector<4x128xf32>, vector<16x128xf32> -> vector<16x128xf32>
      %54 = arith.addf %49, %53 : vector<16x128xf32>
      %55 = vector.extract_strided_slice %44 {offsets = [2, 0], sizes = [16, 4], strides = [1, 1]} : vector<18x4xf32> to vector<16x4xf32>
      %c5 = arith.constant 5 : index
      %c0_41 = arith.constant 0 : index
      %c0_42 = arith.constant 0 : index
      %56 = vector.load %arg3[%c5, %c0_41, %c0_42] : memref<9x4x128xf32, #tpu.memory_space<vmem>>, vector<1x4x128xf32>
      %57 = vector.shape_cast %56 : vector<1x4x128xf32> to vector<4x128xf32>
      %cst_43 = arith.constant dense<0.000000e+00> : vector<16x128xf32>
      %58 = tpu.matmul %55, %57, %cst_43 {dimension_numbers = #tpu.dot_dimension_numbers<[1], [0], [0], [1], [0, 0, 1, 1], [], []>} : vector<16x4xf32>, vector<4x128xf32>, vector<16x128xf32> -> vector<16x128xf32>
      %59 = arith.addf %54, %58 : vector<16x128xf32>
      %c2_i32 = arith.constant 2 : i32
      %60 = arith.addi %20, %c2_i32 : i32
      %c0_44 = arith.constant 0 : index
      %61 = arith.index_cast %60 : i32 to index
      %c0_45 = arith.constant 0 : index
      %c0_46 = arith.constant 0 : index
      %62 = vector.load %arg2[%c0_44, %61, %c0_45, %c0_46] : memref<1x18x18x4xf32, #tpu.memory_space<vmem>>, vector<1x1x18x4xf32>
      %63 = vector.shape_cast %62 : vector<1x1x18x4xf32> to vector<18x4xf32>
      %64 = vector.extract_strided_slice %63 {offsets = [0, 0], sizes = [16, 4], strides = [1, 1]} : vector<18x4xf32> to vector<16x4xf32>
      %c6 = arith.constant 6 : index
      %c0_47 = arith.constant 0 : index
      %c0_48 = arith.constant 0 : index
      %65 = vector.load %arg3[%c6, %c0_47, %c0_48] : memref<9x4x128xf32, #tpu.memory_space<vmem>>, vector<1x4x128xf32>
      %66 = vector.shape_cast %65 : vector<1x4x128xf32> to vector<4x128xf32>
      %cst_49 = arith.constant dense<0.000000e+00> : vector<16x128xf32>
      %67 = tpu.matmul %64, %66, %cst_49 {dimension_numbers = #tpu.dot_dimension_numbers<[1], [0], [0], [1], [0, 0, 1, 1], [], []>} : vector<16x4xf32>, vector<4x128xf32>, vector<16x128xf32> -> vector<16x128xf32>
      %68 = arith.addf %59, %67 : vector<16x128xf32>
      %69 = vector.extract_strided_slice %63 {offsets = [1, 0], sizes = [16, 4], strides = [1, 1]} : vector<18x4xf32> to vector<16x4xf32>
      %c7 = arith.constant 7 : index
      %c0_50 = arith.constant 0 : index
      %c0_51 = arith.constant 0 : index
      %70 = vector.load %arg3[%c7, %c0_50, %c0_51] : memref<9x4x128xf32, #tpu.memory_space<vmem>>, vector<1x4x128xf32>
      %71 = vector.shape_cast %70 : vector<1x4x128xf32> to vector<4x128xf32>
      %cst_52 = arith.constant dense<0.000000e+00> : vector<16x128xf32>
      %72 = tpu.matmul %69, %71, %cst_52 {dimension_numbers = #tpu.dot_dimension_numbers<[1], [0], [0], [1], [0, 0, 1, 1], [], []>} : vector<16x4xf32>, vector<4x128xf32>, vector<16x128xf32> -> vector<16x128xf32>
      %73 = arith.addf %68, %72 : vector<16x128xf32>
      %74 = vector.extract_strided_slice %63 {offsets = [2, 0], sizes = [16, 4], strides = [1, 1]} : vector<18x4xf32> to vector<16x4xf32>
      %c8 = arith.constant 8 : index
      %c0_53 = arith.constant 0 : index
      %c0_54 = arith.constant 0 : index
      %75 = vector.load %arg3[%c8, %c0_53, %c0_54] : memref<9x4x128xf32, #tpu.memory_space<vmem>>, vector<1x4x128xf32>
      %76 = vector.shape_cast %75 : vector<1x4x128xf32> to vector<4x128xf32>
      %cst_55 = arith.constant dense<0.000000e+00> : vector<16x128xf32>
      %77 = tpu.matmul %74, %76, %cst_55 {dimension_numbers = #tpu.dot_dimension_numbers<[1], [0], [0], [1], [0, 0, 1, 1], [], []>} : vector<16x4xf32>, vector<4x128xf32>, vector<16x128xf32> -> vector<16x128xf32>
      %78 = arith.addf %73, %77 : vector<16x128xf32>
      %c0_56 = arith.constant 0 : index
      %79 = arith.index_cast %arg7 : i32 to index
      %c0_57 = arith.constant 0 : index
      %c0_58 = arith.constant 0 : index
      %80 = vector.load %arg4[%c0_56, %79, %c0_57, %c0_58] : memref<1x16x16x128xf32, #tpu.memory_space<vmem>>, vector<1x1x16x128xf32>
      %81 = vector.shape_cast %80 : vector<1x1x16x128xf32> to vector<16x128xf32>
      %82 = vector.shape_cast %78 : vector<16x128xf32> to vector<1x1x16x128xf32>
      tpu.vector_store %arg4[%c0_56, %79, %c0_57, %c0_58], %82 {strides = array<i32>} : memref<1x16x16x128xf32, #tpu.memory_space<vmem>>, vector<1x1x16x128xf32>,
      %cst_59 = arith.constant dense<0.000000e+00> : vector<128xf32>
      %83 = vector.multi_reduction <add>, %78, %cst_59 [0] : vector<16x128xf32> to vector<128xf32>
      %84 = vector.shape_cast %83 : vector<128xf32> to vector<1x128xf32>
      %85 = arith.addf %arg8, %84 : vector<1x128xf32>
      %86 = arith.mulf %78, %78 : vector<16x128xf32>
      %cst_60 = arith.constant dense<0.000000e+00> : vector<128xf32>
      %87 = vector.multi_reduction <add>, %86, %cst_60 [0] : vector<16x128xf32> to vector<128xf32>
      %88 = vector.shape_cast %87 : vector<128xf32> to vector<1x128xf32>
      %89 = arith.addf %arg9, %88 : vector<1x128xf32>
      scf.yield %85, %89 : vector<1x128xf32>, vector<1x128xf32>
    }
    %c16_i32_2 = arith.constant 16 : i32
    %c0 = arith.constant 0 : index
    %c0_3 = arith.constant 0 : index
    %c0_4 = arith.constant 0 : index
    %6 = vector.load %arg5[%c0, %c0_3, %c0_4] : memref<1x8x128xf32, #tpu.memory_space<vmem>>, vector<1x1x128xf32>
    %7 = vector.shape_cast %6 : vector<1x1x128xf32> to vector<1x128xf32>
    %8 = arith.addf %7, %5#0 : vector<1x128xf32>
    %c0_5 = arith.constant 0 : index
    %c0_6 = arith.constant 0 : index
    %c0_7 = arith.constant 0 : index
    %9 = vector.load %arg5[%c0_5, %c0_6, %c0_7] : memref<1x8x128xf32, #tpu.memory_space<vmem>>, vector<1x1x128xf32>
    %10 = vector.shape_cast %9 : vector<1x1x128xf32> to vector<1x128xf32>
    %11 = vector.shape_cast %8 : vector<1x128xf32> to vector<1x1x128xf32>
    tpu.vector_store %arg5[%c0_5, %c0_6, %c0_7], %11 {strides = array<i32>} : memref<1x8x128xf32, #tpu.memory_space<vmem>>, vector<1x1x128xf32>,
    %c0_8 = arith.constant 0 : index
    %c0_9 = arith.constant 0 : index
    %c0_10 = arith.constant 0 : index
    %12 = vector.load %arg6[%c0_8, %c0_9, %c0_10] : memref<1x8x128xf32, #tpu.memory_space<vmem>>, vector<1x1x128xf32>
    %13 = vector.shape_cast %12 : vector<1x1x128xf32> to vector<1x128xf32>
    %14 = arith.addf %13, %5#1 : vector<1x128xf32>
    %c0_11 = arith.constant 0 : index
    %c0_12 = arith.constant 0 : index
    %c0_13 = arith.constant 0 : index
    %15 = vector.load %arg6[%c0_11, %c0_12, %c0_13] : memref<1x8x128xf32, #tpu.memory_space<vmem>>, vector<1x1x128xf32>
    %16 = vector.shape_cast %15 : vector<1x1x128xf32> to vector<1x128xf32>
    %17 = vector.shape_cast %14 : vector<1x128xf32> to vector<1x1x128xf32>
    tpu.vector_store %arg6[%c0_11, %c0_12, %c0_13], %17 {strides = array<i32>} : memref<1x8x128xf32, #tpu.memory_space<vmem>>, vector<1x1x128xf32>,
    return
  }
  func.func @transform_0(%arg0: i32, %arg1: i32) -> (i32, i32, i32, i32) {
    %c0_i32 = arith.constant 0 : i32
    %c0_i32_0 = arith.constant 0 : i32
    %c0_i32_1 = arith.constant 0 : i32
    %c0_i32_2 = arith.constant 0 : i32
    return %arg0, %c0_i32, %c0_i32_0, %c0_i32_1 : i32, i32, i32, i32
  }
  func.func @transform_1(%arg0: i32, %arg1: i32) -> (i32, i32, i32) {
    %c0_i32 = arith.constant 0 : i32
    %c0_i32_0 = arith.constant 0 : i32
    %c0_i32_1 = arith.constant 0 : i32
    %c0_i32_2 = arith.constant 0 : i32
    return %c0_i32, %c0_i32_0, %c0_i32_1 : i32, i32, i32
  }
  func.func @transform_2(%arg0: i32, %arg1: i32) -> (i32, i32, i32, i32) {
    %c0_i32 = arith.constant 0 : i32
    %c0_i32_0 = arith.constant 0 : i32
    %c0_i32_1 = arith.constant 0 : i32
    return %arg0, %arg1, %c0_i32, %c0_i32_0 : i32, i32, i32, i32
  }
  func.func @transform_3(%arg0: i32, %arg1: i32) -> (i32, i32, i32) {
    %c0_i32 = arith.constant 0 : i32
    %c0_i32_0 = arith.constant 0 : i32
    %c0_i32_1 = arith.constant 0 : i32
    return %arg0, %c0_i32, %c0_i32_0 : i32, i32, i32
  }
  func.func @transform_4(%arg0: i32, %arg1: i32) -> (i32, i32, i32) {
    %c0_i32 = arith.constant 0 : i32
    %c0_i32_0 = arith.constant 0 : i32
    %c0_i32_1 = arith.constant 0 : i32
    return %arg0, %c0_i32, %c0_i32_0 : i32, i32, i32
  }
}

</mosaic_0001>

<llo_original>
// kernel: tpu_custom_call.1
$region0: #{tpu_custom_call.1}
  #allocation0 [shape = 'u32[]', space=smem, size = 0x4, offset = 0x4, fixed_abs, tag = 'smem constant byte address 0x4 - core index']
  #allocation1 [shape = 'u32[72,128]{1,0:T(1,128)}', space=vmem, size = 0x9000, scoped, tag = 'internal scratch']
  %s0 = inlined_call_operand.vmem [shape: f32[2,18,18,4], index: 0, kind: input, shape index: {}]
  %s1 = inlined_call_operand.vmem [shape: f32[9,4,128], index: 1, kind: input, shape index: {}]
  %s2 = inlined_call_operand.hbm [shape: f32[2,16,16,128], index: 2, kind: output, shape index: {0}]
  %s3 = inlined_call_operand.hbm [shape: f32[2,8,128], index: 3, kind: output, shape index: {1}]
  %s4 = inlined_call_operand.hbm [shape: f32[2,8,128], index: 4, kind: output, shape index: {2}]
  %5 = xla_tuple %s2, %s3, %s4
  %s6 = sld [smem:[#allocation0]]
  $region68: #{tpu_custom_call.1} parent=0
    _
  %s8 = ssub.s32 1, %s6
  %s9 = scalar_select 0, %s8, %s6
  $region1: #{tpu_custom_call.1} parent=0
    #allocation2 [shape = 'u8[262144]{0}', space=vmem, size = 0x40000, scoped, tag = 'output window, operand 0']
    #allocation3 [shape = 's32[2]{0}', space=sflag, size = 0x8, scoped, tag = 'scoped memory for tpu_custom_call.1']
    #allocation4 [shape = 'u8[8192]{0}', space=vmem, size = 0x2000, scoped, tag = 'output window, operand 1']
    #allocation5 [shape = 's32[2]{0}', space=sflag, size = 0x8, scoped, tag = 'scoped memory for tpu_custom_call.1']
    #allocation6 [shape = 'u8[8192]{0}', space=vmem, size = 0x2000, scoped, tag = 'output window, operand 2']
    %10 = vsyncpa [#allocation3], 0
    %s11 = scalar_lea.sflag [#allocation3], 1
    %12 = vsyncpa %s11, 0
    %13 = vsyncpa [#allocation5], 0
    %s14 = scalar_lea.sflag [#allocation5], 1
    %15 = vsyncpa %s14, 0
    loop: start=0, step=1, limit=4
    $region2: #{tpu_custom_call.1} parent=1 // loop_pre_header
      _
    $region3: #{tpu_custom_call.1} parent=1 // loop_header
      %s17 = sphi 0, %s21
      %p18 = scmp.ge.s32.totalorder %s17, 4
      %s24 = sphi 0, %s36
      %s25 = sphi 0, %s32
      %s26 = sphi 0, %s24
      %s27 = sphi 0, %s25
      %s28 = sphi 0, %s26
      %s29 = sphi 0, %s27
      %s39 = sphi 0, %s41
      %s42 = sphi 0, %s39
      %s43 = sphi 0, %s42
      %s59 = sphi 0, %s43
      %s63 = sphi 0, %s63
      %s65 = sphi 0, %s63
      %s66 = sphi 0, %s65
      %s80 = sphi 0, %s66
      %s88 = sphi 0, %s90
      %s91 = sphi 0, %s88
      %s92 = sphi 0, %s91
      %s108 = sphi 0, %s92
      %s114 = sphi 0, %s116
      %s117 = sphi 0, %s114
      %s118 = sphi 0, %s117
      %s134 = sphi 0, %s118
      %s140 = sphi 0, %s142
      %s143 = sphi 0, %s140
      %s144 = sphi 0, %s143
      %s160 = sphi 0, %s144
    $region4: #{tpu_custom_call.1} parent=1 // loop_header_branch
      %20 = sbr.rel (%p18) target = $region8
    $region5: #{tpu_custom_call.1} parent=1 // loop_body
      %s22 = ssub.s32 %s17, 1
      %s23 = ssub.s32 %s17, 2
      %s30 = sadd.s32 1, %s25
      %p31 = scmp.ge.s32.totalorder %s30, 1
      %s32 = scalar_select %p31, 0, %s30
      %s33 = sadd.s32 1, %s24
      %s34 = scalar_select %p31, %s33, %s24
      %p35 = scmp.ge.s32.totalorder %s34, 2
      %s36 = scalar_select %p35, 0, %s34
      %s37 = ssub.s32 %s24, %s36
      %p38 = scmp.eq.s32.totalorder %s37, 0
      %s40 = sadd.s32 %s39, 1
      %s41 = scalar_select %p38, %s39, %s40
      %p44 = pneg %p38
      %p45 = scmp.eq.s32.totalorder %s17, 1
      %p46 = por %p44, %p45
      %p47 = scmp.ne.s32.totalorder %s39, %s42
      %p48 = scmp.eq.s32.totalorder %s17, 0
      %p49 = por %p47, %p48
      %p50 = scmp.ne.s32.totalorder %s39, %s42
      %p51 = scmp.eq.s32.totalorder %s22, 1
      %p52 = por %p50, %p51
      %p53 = scmp.ne.s32.totalorder %s42, %s43
      %p54 = scmp.eq.s32.totalorder %s22, 0
      %p55 = por %p53, %p54
      %p56 = scmp.ne.s32.totalorder %s42, %s43
      %p57 = scmp.eq.s32.totalorder %s23, 1
      %p58 = por %p56, %p57
      %p60 = scmp.ne.s32.totalorder %s43, %s59
      %p61 = scmp.eq.s32.totalorder %s23, 0
      %p62 = por %p60, %p61
      %s64 = sadd.s32 %s63, 1
      %p67 = scmp.eq.s32.totalorder %s17, 1
      %p68 = scmp.ne.s32.totalorder %s63, %s65
      %p69 = scmp.eq.s32.totalorder %s17, 0
      %p70 = por %p68, %p69
      %p71 = scmp.ne.s32.totalorder %s63, %s65
      %p72 = scmp.eq.s32.totalorder %s22, 1
      %p73 = por %p71, %p72
      %p74 = scmp.ne.s32.totalorder %s65, %s66
      %p75 = scmp.eq.s32.totalorder %s22, 0
      %p76 = por %p74, %p75
      %p77 = scmp.ne.s32.totalorder %s65, %s66
      %p78 = scmp.eq.s32.totalorder %s23, 1
      %p79 = por %p77, %p78
      %p81 = scmp.ne.s32.totalorder %s66, %s80
      %p82 = scmp.eq.s32.totalorder %s23, 0
      %p83 = por %p81, %p82
      %s84 = ssub.s32 %s24, %s36
      %s85 = ssub.s32 %s25, %s32
      %s86 = sor.u32 %s84, %s85
      %p87 = scmp.eq.s32.totalorder %s86, 0
      %s89 = sadd.s32 %s88, 1
      %s90 = scalar_select %p87, %s88, %s89
      %p93 = pneg %p87
      %p94 = scmp.eq.s32.totalorder %s17, 1
      %p95 = por %p93, %p94
      %p96 = scmp.ne.s32.totalorder %s88, %s91
      %p97 = scmp.eq.s32.totalorder %s17, 0
      %p98 = por %p96, %p97
      %p99 = scmp.ne.s32.totalorder %s88, %s91
      %p100 = scmp.eq.s32.totalorder %s22, 1
      %p101 = por %p99, %p100
      %p102 = scmp.ne.s32.totalorder %s91, %s92
      %p103 = scmp.eq.s32.totalorder %s22, 0
      %p104 = por %p102, %p103
      %p105 = scmp.ne.s32.totalorder %s91, %s92
      %p106 = scmp.eq.s32.totalorder %s23, 1
      %p107 = por %p105, %p106
      %p109 = scmp.ne.s32.totalorder %s92, %s108
      %p110 = scmp.eq.s32.totalorder %s23, 0
      %p111 = por %p109, %p110
      %s112 = ssub.s32 %s24, %s36
      %p113 = scmp.eq.s32.totalorder %s112, 0
      %s115 = sadd.s32 %s114, 1
      %s116 = scalar_select %p113, %s114, %s115
      %p119 = pneg %p113
      %p120 = scmp.eq.s32.totalorder %s17, 1
      %p121 = por %p119, %p120
      %p122 = scmp.ne.s32.totalorder %s114, %s117
      %p123 = scmp.eq.s32.totalorder %s17, 0
      %p124 = por %p122, %p123
      %p125 = scmp.ne.s32.totalorder %s114, %s117
      %p126 = scmp.eq.s32.totalorder %s22, 1
      %p127 = por %p125, %p126
      %p128 = scmp.ne.s32.totalorder %s117, %s118
      %p129 = scmp.eq.s32.totalorder %s22, 0
      %p130 = por %p128, %p129
      %p131 = scmp.ne.s32.totalorder %s117, %s118
      %p132 = scmp.eq.s32.totalorder %s23, 1
      %p133 = por %p131, %p132
      %p135 = scmp.ne.s32.totalorder %s118, %s134
      %p136 = scmp.eq.s32.totalorder %s23, 0
      %p137 = por %p135, %p136
      %s138 = ssub.s32 %s24, %s36
      %p139 = scmp.eq.s32.totalorder %s138, 0
      %s141 = sadd.s32 %s140, 1
      %s142 = scalar_select %p139, %s140, %s141
      %p145 = pneg %p139
      %p146 = scmp.eq.s32.totalorder %s17, 1
      %p147 = por %p145, %p146
      %p148 = scmp.ne.s32.totalorder %s140, %s143
      %p149 = scmp.eq.s32.totalorder %s17, 0
      %p150 = por %p148, %p149
      %p151 = scmp.ne.s32.totalorder %s140, %s143
      %p152 = scmp.eq.s32.totalorder %s22, 1
      %p153 = por %p151, %p152
      %p154 = scmp.ne.s32.totalorder %s143, %s144
      %p155 = scmp.eq.s32.totalorder %s22, 0
      %p156 = por %p154, %p155
      %p157 = scmp.ne.s32.totalorder %s143, %s144
      %p158 = scmp.eq.s32.totalorder %s23, 1
      %p159 = por %p157, %p158
      %p161 = scmp.ne.s32.totalorder %s144, %s160
      %p162 = scmp.eq.s32.totalorder %s23, 0
      %p163 = por %p161, %p162
      %p164 = scmp.le.s32.totalorder 1, %s17
      %p165 = scmp.lt.s32.totalorder %s17, 3
      %p166 = pnand %p164, %p165
      %p167 = pneg %p166
      // Predicated region
      $region9: #{tpu_custom_call.1} parent=5 // pred_check
        _
      $region10: #{tpu_custom_call.1} parent=5 // pred_check_branch
        %169 = sbr.rel (%p166) target = $region12
      $region11: #{tpu_custom_call.1} parent=5 // pred_region
        %s170 = ssub.s32 %s17, 1
        // Predicated region
        $region13: #{tpu_custom_call.1} parent=11 // pred_check
          %p171 = pneg %p76
        $region14: #{tpu_custom_call.1} parent=11 // pred_check_branch
          %173 = sbr.rel (%p171) target = $region16
        $region15: #{tpu_custom_call.1} parent=11 // pred_region
          _
        $region16: #{tpu_custom_call.1} parent=11 // pred_fallthru
          _
      $region12: #{tpu_custom_call.1} parent=5 // pred_fallthru
        _
      %p174 = scmp.lt.s32.totalorder %s17, 2
      // Predicated region
      $region17: #{tpu_custom_call.1} parent=5 // pred_check
        %p175 = pneg %p174
      $region18: #{tpu_custom_call.1} parent=5 // pred_check_branch
        %177 = sbr.rel (%p175) target = $region20
      $region19: #{tpu_custom_call.1} parent=5 // pred_region
        // Predicated region
        $region21: #{tpu_custom_call.1} parent=19 // pred_check
          %p178 = pneg %p49
        $region22: #{tpu_custom_call.1} parent=19 // pred_check_branch
          %180 = sbr.rel (%p178) target = $region24
        $region23: #{tpu_custom_call.1} parent=19 // pred_region
          %p181 = scmp.lt.s32.totalorder %s24, 1
          %s182 = scalar_select %p181, %s24, 1
          %s183 = smul.addr %s182, 54
          %s184 = smul.addr %s183, 8
          %s185 = scalar_lea.vmem %s0, %s184
        $region24: #{tpu_custom_call.1} parent=19 // pred_fallthru
          _
      $region20: #{tpu_custom_call.1} parent=5 // pred_fallthru
        _
      %p186 = scmp.le.s32.totalorder 1, %s17
      %p187 = scmp.lt.s32.totalorder %s17, 3
      %p188 = pnand %p186, %p187
      %p189 = pneg %p188
      // Predicated region
      $region25: #{tpu_custom_call.1} parent=5 // pred_check
        _
      $region26: #{tpu_custom_call.1} parent=5 // pred_check_branch
        %191 = sbr.rel (%p188) target = $region28
      $region27: #{tpu_custom_call.1} parent=5 // pred_region
        %s192 = ssub.s32 %s17, 1
        %p193 = scmp.lt.s32.totalorder %s26, 1
        %s194 = scalar_select %p193, %s26, 1
        %s195 = smul.addr %s194, 54
        %s196 = smul.addr %s195, 8
        %s197 = scalar_lea.vmem %s0, %s196
        %p198 = pneg %p55
        %p199 = pneg %p52
        %p200 = pneg %p76
        %p201 = pneg %p73
        %p202 = pneg %p104
        %p203 = pneg %p101
        %s204 = sand.u32 %s91, 1
        %s205 = scalar_lea.sflag [#allocation3], %s204
        %s206 = sand.u32 %s91, 1
        %s207 = smul.addr %s206, 256
        %s208 = scalar_lea.vmem [#allocation2], %s207
        %p209 = pneg %p130
        %p210 = pneg %p127
        %s211 = sand.u32 %s22, 1
        %s212 = scalar_lea.sflag [#allocation5], %s211
        %s213 = sand.u32 %s117, 1
        %s214 = smul.addr %s213, 8
        %s215 = scalar_lea.vmem [#allocation4], %s214
        %p216 = pneg %p156
        %p217 = pneg %p153
        %s218 = sand.u32 %s22, 1
        %s219 = scalar_lea.sflag [#allocation5], %s218
        %s220 = sand.u32 %s143, 1
        %s221 = smul.addr %s220, 8
        %s222 = scalar_lea.vmem [#allocation6], %s221
        %p223 = scmp.lt.s32.totalorder %s26, 1
        %s224 = scalar_select %p223, %s26, 1
        %s225 = smul.addr %s224, 54
        %s226 = smul.addr %s225, 8
        %s227 = scalar_lea.vmem %s0, %s226
        %s228 = smul.u32 16, %s27
        %p229 = scmp.eq.s32.totalorder %s27, 0
        // Predicated region
        $region29: #{tpu_custom_call.1} parent=27 // pred_check
          %p230 = pneg %p229
        $region30: #{tpu_custom_call.1} parent=27 // pred_check_branch
          %232 = sbr.rel (%p230) target = $region32
        $region31: #{tpu_custom_call.1} parent=27 // pred_region
          %233 = vst [vmem:[%s215] sm:$0xff] 0.0
          %234 = vst [vmem:[%s222] sm:$0xff] 0.0
        $region32: #{tpu_custom_call.1} parent=27 // pred_fallthru
          _
        loop: start=0, step=1, limit=16
        $region33: #{tpu_custom_call.1} parent=27 // loop_pre_header
          _
        $region34: #{tpu_custom_call.1} parent=27 // loop_header
          %s236 = sphi 0, %s240
          %p237 = scmp.ge.s32.totalorder %s236, 16
          %v241 = vphi 0.0, %v617
          %v242 = vphi 0.0, %v627
        $region35: #{tpu_custom_call.1} parent=27 // loop_header_branch
          %239 = sbr.rel (%p237) target = $region39
        $region36: #{tpu_custom_call.1} parent=27 // loop_body
          %s243 = smul.u32 %s27, 16
          %s244 = sadd.s32 %s243, %s236
          %s245 = smul.u32 %s244, 24
          %s246 = scalar_lea.vmem %s227, %s245
          %v247 = vld [vmem:[%s246] sm:$0xff]
          %v248 = vld [vmem:[%s246 + $0x8] sm:$0xff]
          %v249 = vld [vmem:[%s246 + $0x10] sm:$0x3]
          %v250 = vld [vmem:[%s1] sm:$0xf]
          %s251 = scalar_lea.vmem %s1, 4
          %v252 = vld [vmem:[%s251] sm:$0xf]
          %vm256 = vcmask 1046528
          %v257 = vrot.slane %v247, 1
          %v258 = vrot.slane %v248, 1
          %v259 = vsel %vm256, %v257, %v258
          %v260 = vrot.slane %v249, 1
          %v261 = vsel %vm256, %v258, %v260
          %vm262 = vcmask 31744
          %v263 = vsel %vm262, %v259, 0
          %v265 = vsel %vm262, %v261, 0
          %vm267 = vcmask 1043456
          %v269 = vsel %vm267, %v252, 0
          %271 = vmatpush.msra.mxu0 0.0
          %272 = vmatpush.msra.mxu0 0.0
          %273 = vmatpush.msra.mxu0 0.0
          %274 = vmatpush.msra.mxu0 0.0
          %275 = vmatpush.msra.mxu0 0.0
          %276 = vmatpush.msra.mxu0 0.0
          %277 = vmatpush.msra.mxu0 0.0
          %278 = vmatpush.msra.mxu0 0.0
          %279 = vmatpush.msra.mxu0 0.0
          %280 = vmatpush.msra.mxu0 0.0
          %281 = vmatpush.msra.mxu0 0.0
          %282 = vmatpush.msra.mxu0 0.0
          %283 = vmatpush.msra.mxu0 0.0
          %284 = vmatpush.msra.mxu0 0.0
          %285 = vmatpush.msra.mxu0 0.0
          %286 = vmatpush.msra.mxu0 %v269
          %287 = vmatmul.f32.gmra.mxu0 %v263
          %v288 = vpop.f32.mrf.mxu0
          %v289 = vadd.f32 0.0, %v288
          %290 = vmatmul.f32.gmra.mxu0 %v265
          %v291 = vpop.f32.mrf.mxu0
          %v292 = vadd.f32 0.0, %v291
          %293 = vdwg.mxu0
          %v294 = vsel %vm262, %v247, 0
          %v296 = vsel %vm262, %v248, 0
          %v299 = vsel %vm267, %v250, 0
          %301 = vmatpush.msra.mxu0 0.0
          %302 = vmatpush.msra.mxu0 0.0
          %303 = vmatpush.msra.mxu0 0.0
          %304 = vmatpush.msra.mxu0 0.0
          %305 = vmatpush.msra.mxu0 0.0
          %306 = vmatpush.msra.mxu0 0.0
          %307 = vmatpush.msra.mxu0 0.0
          %308 = vmatpush.msra.mxu0 0.0
          %309 = vmatpush.msra.mxu0 0.0
          %310 = vmatpush.msra.mxu0 0.0
          %311 = vmatpush.msra.mxu0 0.0
          %312 = vmatpush.msra.mxu0 0.0
          %313 = vmatpush.msra.mxu0 0.0
          %314 = vmatpush.msra.mxu0 0.0
          %315 = vmatpush.msra.mxu0 0.0
          %316 = vmatpush.msra.mxu0 %v299
          %317 = vmatmul.f32.gmra.mxu0 %v294
          %v318 = vpop.f32.mrf.mxu0
          %v319 = vadd.f32 %v289, %v318
          %320 = vmatmul.f32.gmra.mxu0 %v296
          %v321 = vpop.f32.mrf.mxu0
          %v322 = vadd.f32 %v292, %v321
          %323 = vdwg.mxu0
          %s324 = scalar_lea.vmem %s1, 8
          %v325 = vld [vmem:[%s324] sm:$0xf]
          %vm326 = vcmask 1045504
          %v327 = vrot.slane %v247, 2
          %v328 = vrot.slane %v248, 2
          %v329 = vsel %vm326, %v327, %v328
          %v330 = vrot.slane %v249, 2
          %v331 = vsel %vm326, %v328, %v330
          %v332 = vsel %vm262, %v329, 0
          %v334 = vsel %vm262, %v331, 0
          %v337 = vsel %vm267, %v325, 0
          %339 = vmatpush.msra.mxu0 0.0
          %340 = vmatpush.msra.mxu0 0.0
          %341 = vmatpush.msra.mxu0 0.0
          %342 = vmatpush.msra.mxu0 0.0
          %343 = vmatpush.msra.mxu0 0.0
          %344 = vmatpush.msra.mxu0 0.0
          %345 = vmatpush.msra.mxu0 0.0
          %346 = vmatpush.msra.mxu0 0.0
          %347 = vmatpush.msra.mxu0 0.0
          %348 = vmatpush.msra.mxu0 0.0
          %349 = vmatpush.msra.mxu0 0.0
          %350 = vmatpush.msra.mxu0 0.0
          %351 = vmatpush.msra.mxu0 0.0
          %352 = vmatpush.msra.mxu0 0.0
          %353 = vmatpush.msra.mxu0 0.0
          %354 = vmatpush.msra.mxu0 %v337
          %355 = vmatmul.f32.gmra.mxu0 %v332
          %v356 = vpop.f32.mrf.mxu0
          %v357 = vadd.f32 0.0, %v356
          %358 = vmatmul.f32.gmra.mxu0 %v334
          %v359 = vpop.f32.mrf.mxu0
          %v360 = vadd.f32 0.0, %v359
          %361 = vdwg.mxu0
          %v362 = vadd.f32 %v319, %v357
          %v363 = vadd.f32 %v322, %v360
          %s364 = sadd.s32 %s244, 1
          %s365 = smul.u32 %s364, 24
          %s366 = scalar_lea.vmem %s227, %s365
          %v367 = vld [vmem:[%s366] sm:$0xff]
          %v368 = vld [vmem:[%s366 + $0x8] sm:$0xff]
          %v369 = vld [vmem:[%s366 + $0x10] sm:$0x3]
          %s370 = scalar_lea.vmem %s1, 12
          %v371 = vld [vmem:[%s370] sm:$0xf]
          %v373 = vsel %vm262, %v367, 0
          %v376 = vsel %vm262, %v368, 0
          %v379 = vsel %vm267, %v371, 0
          %381 = vmatpush.msra.mxu0 0.0
          %382 = vmatpush.msra.mxu0 0.0
          %383 = vmatpush.msra.mxu0 0.0
          %384 = vmatpush.msra.mxu0 0.0
          %385 = vmatpush.msra.mxu0 0.0
          %386 = vmatpush.msra.mxu0 0.0
          %387 = vmatpush.msra.mxu0 0.0
          %388 = vmatpush.msra.mxu0 0.0
          %389 = vmatpush.msra.mxu0 0.0
          %390 = vmatpush.msra.mxu0 0.0
          %391 = vmatpush.msra.mxu0 0.0
          %392 = vmatpush.msra.mxu0 0.0
          %393 = vmatpush.msra.mxu0 0.0
          %394 = vmatpush.msra.mxu0 0.0
          %395 = vmatpush.msra.mxu0 0.0
          %396 = vmatpush.msra.mxu0 %v379
          %397 = vmatmul.f32.gmra.mxu0 %v373
          %v398 = vpop.f32.mrf.mxu0
          %v399 = vadd.f32 0.0, %v398
          %400 = vmatmul.f32.gmra.mxu0 %v376
          %v401 = vpop.f32.mrf.mxu0
          %v402 = vadd.f32 0.0, %v401
          %403 = vdwg.mxu0
          %v404 = vadd.f32 %v362, %v399
          %v405 = vadd.f32 %v363, %v402
          %s406 = scalar_lea.vmem %s1, 16
          %v407 = vld [vmem:[%s406] sm:$0xf]
          %v409 = vrot.slane %v367, 1
          %v410 = vrot.slane %v368, 1
          %v411 = vsel %vm256, %v409, %v410
          %v412 = vrot.slane %v369, 1
          %v413 = vsel %vm256, %v410, %v412
          %v414 = vsel %vm262, %v411, 0
          %v416 = vsel %vm262, %v413, 0
          %v419 = vsel %vm267, %v407, 0
          %421 = vmatpush.msra.mxu0 0.0
          %422 = vmatpush.msra.mxu0 0.0
          %423 = vmatpush.msra.mxu0 0.0
          %424 = vmatpush.msra.mxu0 0.0
          %425 = vmatpush.msra.mxu0 0.0
          %426 = vmatpush.msra.mxu0 0.0
          %427 = vmatpush.msra.mxu0 0.0
          %428 = vmatpush.msra.mxu0 0.0
          %429 = vmatpush.msra.mxu0 0.0
          %430 = vmatpush.msra.mxu0 0.0
          %431 = vmatpush.msra.mxu0 0.0
          %432 = vmatpush.msra.mxu0 0.0
          %433 = vmatpush.msra.mxu0 0.0
          %434 = vmatpush.msra.mxu0 0.0
          %435 = vmatpush.msra.mxu0 0.0
          %436 = vmatpush.msra.mxu0 %v419
          %437 = vmatmul.f32.gmra.mxu0 %v414
          %v438 = vpop.f32.mrf.mxu0
          %v439 = vadd.f32 0.0, %v438
          %440 = vmatmul.f32.gmra.mxu0 %v416
          %v441 = vpop.f32.mrf.mxu0
          %v442 = vadd.f32 0.0, %v441
          %443 = vdwg.mxu0
          %v444 = vadd.f32 %v404, %v439
          %v445 = vadd.f32 %v405, %v442
          %s446 = scalar_lea.vmem %s1, 20
          %v447 = vld [vmem:[%s446] sm:$0xf]
          %v448 = vrot.slane %v367, 2
          %v449 = vrot.slane %v368, 2
          %v450 = vsel %vm326, %v448, %v449
          %v451 = vrot.slane %v369, 2
          %v452 = vsel %vm326, %v449, %v451
          %v453 = vsel %vm262, %v450, 0
          %v455 = vsel %vm262, %v452, 0
          %v458 = vsel %vm267, %v447, 0
          %460 = vmatpush.msra.mxu0 0.0
          %461 = vmatpush.msra.mxu0 0.0
          %462 = vmatpush.msra.mxu0 0.0
          %463 = vmatpush.msra.mxu0 0.0
          %464 = vmatpush.msra.mxu0 0.0
          %465 = vmatpush.msra.mxu0 0.0
          %466 = vmatpush.msra.mxu0 0.0
          %467 = vmatpush.msra.mxu0 0.0
          %468 = vmatpush.msra.mxu0 0.0
          %469 = vmatpush.msra.mxu0 0.0
          %470 = vmatpush.msra.mxu0 0.0
          %471 = vmatpush.msra.mxu0 0.0
          %472 = vmatpush.msra.mxu0 0.0
          %473 = vmatpush.msra.mxu0 0.0
          %474 = vmatpush.msra.mxu0 0.0
          %475 = vmatpush.msra.mxu0 %v458
          %476 = vmatmul.f32.gmra.mxu0 %v453
          %v477 = vpop.f32.mrf.mxu0
          %v478 = vadd.f32 0.0, %v477
          %479 = vmatmul.f32.gmra.mxu0 %v455
          %v480 = vpop.f32.mrf.mxu0
          %v481 = vadd.f32 0.0, %v480
          %482 = vdwg.mxu0
          %v483 = vadd.f32 %v444, %v478
          %v484 = vadd.f32 %v445, %v481
          %s485 = sadd.s32 %s244, 2
          %s486 = smul.u32 %s485, 24
          %s487 = scalar_lea.vmem %s227, %s486
          %v488 = vld [vmem:[%s487] sm:$0xff]
          %v489 = vld [vmem:[%s487 + $0x8] sm:$0xff]
          %v490 = vld [vmem:[%s487 + $0x10] sm:$0x3]
          %s491 = scalar_lea.vmem %s1, 24
          %v492 = vld [vmem:[%s491] sm:$0xf]
          %v494 = vsel %vm262, %v488, 0
          %v497 = vsel %vm262, %v489, 0
          %v500 = vsel %vm267, %v492, 0
          %502 = vmatpush.msra.mxu0 0.0
          %503 = vmatpush.msra.mxu0 0.0
          %504 = vmatpush.msra.mxu0 0.0
          %505 = vmatpush.msra.mxu0 0.0
          %506 = vmatpush.msra.mxu0 0.0
          %507 = vmatpush.msra.mxu0 0.0
          %508 = vmatpush.msra.mxu0 0.0
          %509 = vmatpush.msra.mxu0 0.0
          %510 = vmatpush.msra.mxu0 0.0
          %511 = vmatpush.msra.mxu0 0.0
          %512 = vmatpush.msra.mxu0 0.0
          %513 = vmatpush.msra.mxu0 0.0
          %514 = vmatpush.msra.mxu0 0.0
          %515 = vmatpush.msra.mxu0 0.0
          %516 = vmatpush.msra.mxu0 0.0
          %517 = vmatpush.msra.mxu0 %v500
          %518 = vmatmul.f32.gmra.mxu0 %v494
          %v519 = vpop.f32.mrf.mxu0
          %v520 = vadd.f32 0.0, %v519
          %521 = vmatmul.f32.gmra.mxu0 %v497
          %v522 = vpop.f32.mrf.mxu0
          %v523 = vadd.f32 0.0, %v522
          %524 = vdwg.mxu0
          %v525 = vadd.f32 %v483, %v520
          %v526 = vadd.f32 %v484, %v523
          %s527 = scalar_lea.vmem %s1, 28
          %v528 = vld [vmem:[%s527] sm:$0xf]
          %v530 = vrot.slane %v488, 1
          %v531 = vrot.slane %v489, 1
          %v532 = vsel %vm256, %v530, %v531
          %v533 = vrot.slane %v490, 1
          %v534 = vsel %vm256, %v531, %v533
          %v535 = vsel %vm262, %v532, 0
          %v537 = vsel %vm262, %v534, 0
          %v540 = vsel %vm267, %v528, 0
          %542 = vmatpush.msra.mxu0 0.0
          %543 = vmatpush.msra.mxu0 0.0
          %544 = vmatpush.msra.mxu0 0.0
          %545 = vmatpush.msra.mxu0 0.0
          %546 = vmatpush.msra.mxu0 0.0
          %547 = vmatpush.msra.mxu0 0.0
          %548 = vmatpush.msra.mxu0 0.0
          %549 = vmatpush.msra.mxu0 0.0
          %550 = vmatpush.msra.mxu0 0.0
          %551 = vmatpush.msra.mxu0 0.0
          %552 = vmatpush.msra.mxu0 0.0
          %553 = vmatpush.msra.mxu0 0.0
          %554 = vmatpush.msra.mxu0 0.0
          %555 = vmatpush.msra.mxu0 0.0
          %556 = vmatpush.msra.mxu0 0.0
          %557 = vmatpush.msra.mxu0 %v540
          %558 = vmatmul.f32.gmra.mxu0 %v535
          %v559 = vpop.f32.mrf.mxu0
          %v560 = vadd.f32 0.0, %v559
          %561 = vmatmul.f32.gmra.mxu0 %v537
          %v562 = vpop.f32.mrf.mxu0
          %v563 = vadd.f32 0.0, %v562
          %564 = vdwg.mxu0
          %v565 = vadd.f32 %v525, %v560
          %v566 = vadd.f32 %v526, %v563
          %s567 = scalar_lea.vmem %s1, 32
          %v568 = vld [vmem:[%s567] sm:$0xf]
          %v569 = vrot.slane %v488, 2
          %v570 = vrot.slane %v489, 2
          %v571 = vsel %vm326, %v569, %v570
          %v572 = vrot.slane %v490, 2
          %v573 = vsel %vm326, %v570, %v572
          %v574 = vsel %vm262, %v571, 0
          %v576 = vsel %vm262, %v573, 0
          %v579 = vsel %vm267, %v568, 0
          %581 = vmatpush.msra.mxu0 0.0
          %582 = vmatpush.msra.mxu0 0.0
          %583 = vmatpush.msra.mxu0 0.0
          %584 = vmatpush.msra.mxu0 0.0
          %585 = vmatpush.msra.mxu0 0.0
          %586 = vmatpush.msra.mxu0 0.0
          %587 = vmatpush.msra.mxu0 0.0
          %588 = vmatpush.msra.mxu0 0.0
          %589 = vmatpush.msra.mxu0 0.0
          %590 = vmatpush.msra.mxu0 0.0
          %591 = vmatpush.msra.mxu0 0.0
          %592 = vmatpush.msra.mxu0 0.0
          %593 = vmatpush.msra.mxu0 0.0
          %594 = vmatpush.msra.mxu0 0.0
          %595 = vmatpush.msra.mxu0 0.0
          %596 = vmatpush.msra.mxu0 %v579
          %597 = vmatmul.f32.gmra.mxu0 %v574
          %v598 = vpop.f32.mrf.mxu0
          %v599 = vadd.f32 0.0, %v598
          %600 = vmatmul.f32.gmra.mxu0 %v576
          %v601 = vpop.f32.mrf.mxu0
          %v602 = vadd.f32 0.0, %v601
          %603 = vdwg.mxu0
          %v604 = vadd.f32 %v565, %v599
          %v605 = vadd.f32 %v566, %v602
          %s606 = smul.u32 %s236, 16
          %s607 = scalar_lea.vmem %s208, %s606 [#allocation2]
          %608 = vst [vmem:[%s607] sm:$0xff] %v604
          %609 = vst [vmem:[%s607 + $0x8] sm:$0xff] %v605
          %v610 = vadd.f32 %v604, %v605
          %v611 = vrot.slane %v610, 4
          %v612 = vadd.f32 %v610, %v611
          %v613 = vrot.slane %v612, 2
          %v614 = vadd.f32 %v612, %v613
          %v615 = vrot.slane %v614, 1
          %v616 = vadd.f32 %v614, %v615
          %v617 = vadd.f32 %v241, %v616
          %v618 = vmul.f32 %v604, %v604
          %v619 = vmul.f32 %v605, %v605
          %v620 = vadd.f32 %v618, %v619
          %v621 = vrot.slane %v620, 4
          %v622 = vadd.f32 %v620, %v621
          %v623 = vrot.slane %v622, 2
          %v624 = vadd.f32 %v622, %v623
          %v625 = vrot.slane %v624, 1
          %v626 = vadd.f32 %v624, %v625
          %v627 = vadd.f32 %v242, %v626
        $region37: #{tpu_custom_call.1} parent=27 // loop_footer
          %s240 = sadd.s32 1, %s236
        $region38: #{tpu_custom_call.1} parent=27 // loop_footer_branch
          %235 = sbr.rel target = $region34
        $region39: #{tpu_custom_call.1} parent=27 // loop_exit
          _
        %v628 = vld [vmem:[%s215] sm:$0x1]
        %v629 = vadd.f32 %v628, %v241
        %630 = vst [vmem:[%s215] sm:$0x1] %v629
        %v631 = vld [vmem:[%s222] sm:$0x1]
        %v632 = vadd.f32 %v631, %v242
        %633 = vst [vmem:[%s222] sm:$0x1] %v632
        %s634 = sand.u32 %s91, 1
        %s635 = scalar_lea.sflag [#allocation3], %s634
        %s636 = sand.u32 %s91, 1
        %s637 = smul.addr %s636, 256
        %s638 = scalar_lea.vmem [#allocation2], %s637
        %s639 = sand.u32 %s22, 1
        %s640 = scalar_lea.sflag [#allocation5], %s639
        %s641 = sand.u32 %s117, 1
        %s642 = smul.addr %s641, 8
        %s643 = scalar_lea.vmem [#allocation4], %s642
        %s644 = sand.u32 %s22, 1
        %s645 = scalar_lea.sflag [#allocation5], %s644
        %s646 = sand.u32 %s143, 1
        %s647 = smul.addr %s646, 8
        %s648 = scalar_lea.vmem [#allocation6], %s647
        // Predicated region
        $region40: #{tpu_custom_call.1} parent=27 // pred_check
          %p649 = pneg %p101
        $region41: #{tpu_custom_call.1} parent=27 // pred_check_branch
          %651 = sbr.rel (%p649) target = $region43
        $region42: #{tpu_custom_call.1} parent=27 // pred_region
          %s652 = smul.u32 16, %s27
          %654 = vsyncadd %s635, 0
          %s655 = smul.addr %s652, 2
          %s656 = smul.addr %s26, 32
          %s657 = sadd.s32 %s655, %s656
          %s658 = smul.addr %s657, 8
          %s659 = scalar_lea.hbm %s2, %s658
          %s660 = sshll.u32 %s638, 4
          %s661 = int_to_ptr.vmem [resolvable:$true] %s660
          %s662 = sshll.u32 %s659, 4
          %s663 = int_to_ptr.hbm [resolvable:$true] %s662
          %668 = dma.vmem_to_hbm [thread:$0]  %s661, 4096, %s663, %s635, 128, 128, 8
        $region43: #{tpu_custom_call.1} parent=27 // pred_fallthru
          _
        // Predicated region
        $region44: #{tpu_custom_call.1} parent=27 // pred_check
          %p669 = pneg %p127
        $region45: #{tpu_custom_call.1} parent=27 // pred_check_branch
          %671 = sbr.rel (%p669) target = $region47
        $region46: #{tpu_custom_call.1} parent=27 // pred_region
          %673 = vsyncadd %s640, 0
          %s674 = smul.addr %s26, 8
          %s675 = scalar_lea.hbm %s3, %s674
          %s677 = sshll.u32 %s643, 4
          %s678 = int_to_ptr.vmem [resolvable:$true] %s677
          %s679 = sshll.u32 %s675, 4
          %s680 = int_to_ptr.hbm [resolvable:$true] %s679
          %682 = dma.vmem_to_hbm [thread:$0]  %s678, 128, %s680, %s640
        $region47: #{tpu_custom_call.1} parent=27 // pred_fallthru
          _
        // Predicated region
        $region48: #{tpu_custom_call.1} parent=27 // pred_check
          %p683 = pneg %p153
        $region49: #{tpu_custom_call.1} parent=27 // pred_check_branch
          %685 = sbr.rel (%p683) target = $region51
        $region50: #{tpu_custom_call.1} parent=27 // pred_region
          %687 = vsyncadd %s645, 0
          %s688 = smul.addr %s26, 8
          %s689 = scalar_lea.hbm %s4, %s688
          %s691 = sshll.u32 %s648, 4
          %s692 = int_to_ptr.vmem [resolvable:$true] %s691
          %s693 = sshll.u32 %s689, 4
          %s694 = int_to_ptr.hbm [resolvable:$true] %s693
          %696 = dma.vmem_to_hbm [thread:$0]  %s692, 128, %s694, %s645
        $region51: #{tpu_custom_call.1} parent=27 // pred_fallthru
          _
      $region28: #{tpu_custom_call.1} parent=5 // pred_fallthru
        _
      %p697 = scmp.le.s32.totalorder 2, %s17
      // Predicated region
      $region52: #{tpu_custom_call.1} parent=5 // pred_check
        %p698 = pneg %p697
      $region53: #{tpu_custom_call.1} parent=5 // pred_check_branch
        %700 = sbr.rel (%p698) target = $region55
      $region54: #{tpu_custom_call.1} parent=5 // pred_region
        %s701 = ssub.s32 %s17, 2
        // Predicated region
        $region56: #{tpu_custom_call.1} parent=54 // pred_check
          %p702 = pneg %p107
        $region57: #{tpu_custom_call.1} parent=54 // pred_check_branch
          %704 = sbr.rel (%p702) target = $region59
        $region58: #{tpu_custom_call.1} parent=54 // pred_region
          %s705 = sand.u32 %s92, 1
          %s706 = scalar_lea.sflag [#allocation3], %s705
          %s707 = sand.u32 %s92, 1
          %s708 = smul.addr %s707, 256
          %s709 = scalar_lea.vmem [#allocation2], %s708
          %711 = dma.done %s706, 4096
        $region59: #{tpu_custom_call.1} parent=54 // pred_fallthru
          _
        // Predicated region
        $region60: #{tpu_custom_call.1} parent=54 // pred_check
          %p712 = pneg %p133
        $region61: #{tpu_custom_call.1} parent=54 // pred_check_branch
          %714 = sbr.rel (%p712) target = $region63
        $region62: #{tpu_custom_call.1} parent=54 // pred_region
          %s715 = sand.u32 %s23, 1
          %s716 = scalar_lea.sflag [#allocation5], %s715
          %s717 = sand.u32 %s118, 1
          %s718 = smul.addr %s717, 8
          %s719 = scalar_lea.vmem [#allocation4], %s718
          %721 = dma.done %s716, 128
        $region63: #{tpu_custom_call.1} parent=54 // pred_fallthru
          _
        // Predicated region
        $region64: #{tpu_custom_call.1} parent=54 // pred_check
          %p722 = pneg %p159
        $region65: #{tpu_custom_call.1} parent=54 // pred_check_branch
          %724 = sbr.rel (%p722) target = $region67
        $region66: #{tpu_custom_call.1} parent=54 // pred_region
          %s725 = sand.u32 %s23, 1
          %s726 = scalar_lea.sflag [#allocation5], %s725
          %s727 = sand.u32 %s144, 1
          %s728 = smul.addr %s727, 8
          %s729 = scalar_lea.vmem [#allocation6], %s728
          %731 = dma.done %s726, 128
        $region67: #{tpu_custom_call.1} parent=54 // pred_fallthru
          _
      $region55: #{tpu_custom_call.1} parent=5 // pred_fallthru
        _
    $region6: #{tpu_custom_call.1} parent=1 // loop_footer
      %s21 = sadd.s32 1, %s17
    $region7: #{tpu_custom_call.1} parent=1 // loop_footer_branch
      %16 = sbr.rel target = $region3
    $region8: #{tpu_custom_call.1} parent=1 // loop_exit
      _
    %732 = vsyncpa [#allocation3], 1
    %s733 = scalar_lea.sflag [#allocation3], 1
    %734 = vsyncpa %s733, 1
    %735 = vsyncpa [#allocation5], 1
    %s736 = scalar_lea.sflag [#allocation5], 1
    %737 = vsyncpa %s736, 1

</llo_original>
